<compile_context>
chip_gen: v5e
topology: v5e:2x2
jax: 0.10.0
libtpu: 0.0.40
codegen_flags: <defaults>
</compile_context>

<pallas_src>
import functools

import jax
import jax.numpy as jnp
from jax.experimental import pallas as pl
from jax.experimental.pallas import tpu as pltpu

LANES = 128


def _round_up(x: int, m: int) -> int:
    return (x + m - 1) // m * m


# ---------------------------------------------------------------------------
# Kernel body: one batch tile ->  relu(x @ W_big + b_big), fused on-chip.
# ---------------------------------------------------------------------------
def _masked_ffwd_kernel(x_ref, w_ref, b_ref, o_ref):
    acc = jnp.dot(x_ref[...], w_ref[...], preferred_element_type=jnp.float32)
    acc = acc + b_ref[...].astype(jnp.float32)
    o_ref[...] = jnp.maximum(acc, 0.0).astype(o_ref.dtype)


# ---------------------------------------------------------------------------
# MADE mask (is_output=False, random_mask=False) -- matches MaskedLinear.
# ---------------------------------------------------------------------------
def make_made_mask(in_degrees, out_features, autoregressive_features):
    in_degrees = jnp.asarray(in_degrees, jnp.int32)
    max_ = max(1, autoregressive_features - 1)
    min_ = min(1, autoregressive_features - 1)
    out_degrees = jnp.arange(out_features, dtype=jnp.int32) % max_ + min_
    mask = (out_degrees[:, None] >= in_degrees[None, :]).astype(jnp.float32)
    return mask, out_degrees


# ---------------------------------------------------------------------------
# One-time parameter packing (outside the per-call hot path):
#   - apply mask to W in its original (out, in) orientation
#   - pad features up to the nearest divisor of 128 (or multiple of 128)
#     so the packed lane width is always a multiple of 128 (lane-dense vst)
#   - transpose to (in, out)
#   - kron(I_P, .) block-diagonal so P samples share one 128-wide lane row
# ---------------------------------------------------------------------------
def pack_masked_linear(weight, bias, mask, features, param_dtype=jnp.float32):
    if features <= LANES:
        f_pad = features
        while LANES % f_pad != 0:
            f_pad += 1
        pack = LANES // f_pad
    else:
        f_pad = _round_up(features, LANES)
        pack = 1

    wm = weight * mask                                      # (out, in)
    bb = bias
    if f_pad != features:
        d = f_pad - features
        wm = jnp.pad(wm, ((0, d), (0, d)))
        bb = jnp.pad(bb, (0, d))

    wm_t = wm.T.astype(param_dtype)                         # (in_pad, out_pad)
    w_big = jnp.kron(jnp.eye(pack, dtype=param_dtype), wm_t)        # (P*Fp, P*Fp)
    b_big = jnp.tile(bb.astype(param_dtype), pack)[None, :]         # (1,   P*Fp)
    return w_big, b_big, pack, f_pad


# ---------------------------------------------------------------------------
# Forward wrapper: lane-dense reshape, batch-adaptive tiling, one pallas_call.
# ---------------------------------------------------------------------------
@functools.partial(jax.jit, static_argnames=("pack", "f_pad", "tile_rows"))
def masked_feedforward_forward(x, w_big, b_big, *, pack, f_pad, tile_rows=4096):
    batch, features = x.shape
    pf = pack * f_pad

    # Keep MXU operand dtypes matched (avoid silent promotion / double weight
    # traffic). w_big/b_big are tiny (<=64 KiB), so this cast is negligible.
    if w_big.dtype != x.dtype:
        w_big = w_big.astype(x.dtype)
        b_big = b_big.astype(x.dtype)

    # Single fused pad covering both batch->pack rounding and lane padding of
    # the feature dim (only emitted when actually needed).
    batch_p = _round_up(batch, pack)
    pad_rows = batch_p - batch
    pad_feats = f_pad - features
    if pad_rows or pad_feats:
        x = jnp.pad(x, ((0, pad_rows), (0, pad_feats)))
    rows = batch_p // pack
    xp = x.reshape(rows, pf)                      # lane-dense packing (free reshape)

    # Batch-adaptive row tile:
    #   * large tiles amortise the ~0.35us fixed per-step overhead
    #   * but keep >=2 grid steps when possible so both v7x TensorCores work
    tr = min(tile_rows, max(8, _round_up(pl.cdiv(rows, 2), 8)))
    grid = (pl.cdiv(rows, tr),)                   # ragged last block handled by Pallas

    # Scoped-VMEM budget from the actual double-buffered footprint
    # (v5e default is only 16 MiB; v7x physical is 64 MiB -> cap at 48 MiB).
    in_b = 2 * tr * pf * x.dtype.itemsize         # input, double-buffered
    out_b = 2 * tr * pf * x.dtype.itemsize        # output, double-buffered
    w_b = 2 * pf * (pf + 1) * w_big.dtype.itemsize
    vmem_limit = min(max(in_b + out_b + w_b + (8 << 20), 24 << 20), 48 << 20)

    out = pl.pallas_call(
        _masked_ffwd_kernel,
        out_shape=jax.ShapeDtypeStruct((rows, pf), x.dtype),
        grid_spec=pltpu.PrefetchScalarGridSpec(
            num_scalar_prefetch=0,
            grid=grid,
            in_specs=[
                # activations: streamed, one (tr, P*Fp) lane-dense tile / step
                pl.BlockSpec((tr, pf), lambda i: (i, 0)),
                # packed weights: constant index_map -> fetched once, resident
                pl.BlockSpec((pf, pf), lambda i: (0, 0)),
                # bias: constant index_map -> fetched once, resident
                pl.BlockSpec((1, pf), lambda i: (0, 0)),
            ],
            out_specs=pl.BlockSpec((tr, pf), lambda i: (i, 0)),
        ),
        compiler_params=pltpu.CompilerParams(
            dimension_semantics=("parallel",),
            vmem_limit_bytes=int(vmem_limit),
        ),
    )(xp, w_big, b_big)

    # Unfold the lane-dense packing only at the very end.
    y = out.reshape(batch_p, f_pad)[:batch, :features]
    return y


# ---------------------------------------------------------------------------
# Demo / correctness checks
# ---------------------------------------------------------------------------
def _reference(x, W, b, mask):
    return jnp.maximum(x @ (W * mask).T + b, 0.0)


def _run_case(key, batch, features, dtype, atol):
    k_w, k_b, k_x = jax.random.split(key, 3)
    af = features
    in_degrees = jnp.arange(1, features + 1, dtype=jnp.int32)
    mask, _deg = make_made_mask(in_degrees, features, af)

    # NOTE: the PyTorch module zero-initialises weight/bias (output would be
    # identically zero); random parameters make the forward non-trivial.
    W = jax.random.normal(k_w, (features, features), jnp.float32) * 0.3
    b = jax.random.normal(k_b, (features,), jnp.float32) * 0.1
    x = jax.random.normal(k_x, (batch, features), jnp.float32)

    w_big, b_big, pack, f_pad = pack_masked_linear(W, b, mask, features,
                                                   param_dtype=dtype)
    y = masked_feedforward_forward(x.astype(dtype), w_big, b_big,
                                   pack=pack, f_pad=f_pad)
    y = jax.block_until_ready(y)

    y_ref = _reference(x, W, b, mask)
    err = float(jnp.max(jnp.abs(y.astype(jnp.float32) - y_ref)))
    assert y.shape == (batch, features), y.shape
    assert err < atol, f"dtype={dtype} features={features} max abs err {err}"


if __name__ == "__main__":
    key = jax.random.PRNGKey(0)
    k0, k1, k2 = jax.random.split(key, 3)

    # f32, features divides 128 (pack=16), batch not a multiple of pack.
    _run_case(k0, batch=40, features=8, dtype=jnp.float32, atol=5e-5)
    # f32, features=10 does NOT divide 128 -> exercises lane-padding path.
    _run_case(k1, batch=33, features=10, dtype=jnp.float32, atol=5e-5)
    # bf16 I/O path (f32 accumulation inside the kernel).
    _run_case(k2, batch=40, features=8, dtype=jnp.bfloat16, atol=1e-1)

    print("KERNEL_OK")
</pallas_src>

<mosaic_0001>
module attributes {stable_mosaic.version = 11 : i64} {
  func.func @_masked_ffwd_kernel(%arg0: i32, %arg1: memref<8x128xf32, #tpu.memory_space<vmem>>, %arg2: memref<128x128xf32, #tpu.memory_space<vmem>>, %arg3: memref<1x128xf32, #tpu.memory_space<vmem>>, %arg4: memref<8x128xf32, #tpu.memory_space<vmem>>) attributes {dimension_semantics = [#tpu.dimension_semantics<parallel>], iteration_bounds = array<i64: 1>, scalar_prefetch = 0 : i64, scratch_operands = 0 : i64, tpu.core_type = #tpu.core_type<tc>, window_params = [{transform_indices = @transform_0, window_bounds = array<i64: 8, 128>}, {pipeline_mode = #tpu.pipeline_mode<synchronous>, transform_indices = @transform_1, window_bounds = array<i64: 128, 128>}, {pipeline_mode = #tpu.pipeline_mode<synchronous>, transform_indices = @transform_2, window_bounds = array<i64: 1, 128>}, {transform_indices = @transform_3, window_bounds = array<i64: 8, 128>}]} {
    %c0 = arith.constant 0 : index
    %c0_0 = arith.constant 0 : index
    %0 = vector.load %arg1[%c0, %c0_0] : memref<8x128xf32, #tpu.memory_space<vmem>>, vector<8x128xf32>
    %c0_1 = arith.constant 0 : index
    %c0_2 = arith.constant 0 : index
    %1 = vector.load %arg2[%c0_1, %c0_2] : memref<128x128xf32, #tpu.memory_space<vmem>>, vector<128x128xf32>
    %cst = arith.constant dense<0.000000e+00> : vector<8x128xf32>
    %2 = tpu.matmul %0, %1, %cst {dimension_numbers = #tpu.dot_dimension_numbers<[1], [0], [0], [1], [0, 0, 1, 1], [], []>} : vector<8x128xf32>, vector<128x128xf32>, vector<8x128xf32> -> vector<8x128xf32>
    %c0_3 = arith.constant 0 : index
    %c0_4 = arith.constant 0 : index
    %3 = vector.load %arg3[%c0_3, %c0_4] : memref<1x128xf32, #tpu.memory_space<vmem>>, vector<1x128xf32>
    %4 = vector.broadcast %3 : vector<1x128xf32> to vector<8x128xf32>
    %5 = arith.addf %2, %4 : vector<8x128xf32>
    %cst_5 = arith.constant 0.000000e+00 : f32
    %6 = vector.broadcast %cst_5 : f32 to vector<8x128xf32>
    %7 = arith.maximumf %5, %6 : vector<8x128xf32>
    %c0_6 = arith.constant 0 : index
    %c0_7 = arith.constant 0 : index
    %8 = vector.load %arg4[%c0_6, %c0_7] : memref<8x128xf32, #tpu.memory_space<vmem>>, vector<8x128xf32>
    tpu.vector_store %arg4[%c0_6, %c0_7], %7 {strides = array<i32>} : memref<8x128xf32, #tpu.memory_space<vmem>>, vector<8x128xf32>,
    return
  }
  func.func @transform_0(%arg0: i32) -> (i32, i32) {
    %c0_i32 = arith.constant 0 : i32
    %c0_i32_0 = arith.constant 0 : i32
    return %arg0, %c0_i32 : i32, i32
  }
  func.func @transform_1(%arg0: i32) -> (i32, i32) {
    %c0_i32 = arith.constant 0 : i32
    %c0_i32_0 = arith.constant 0 : i32
    %c0_i32_1 = arith.constant 0 : i32
    return %c0_i32, %c0_i32_0 : i32, i32
  }
  func.func @transform_2(%arg0: i32) -> (i32, i32) {
    %c0_i32 = arith.constant 0 : i32
    %c0_i32_0 = arith.constant 0 : i32
    %c0_i32_1 = arith.constant 0 : i32
    return %c0_i32, %c0_i32_0 : i32, i32
  }
  func.func @transform_3(%arg0: i32) -> (i32, i32) {
    %c0_i32 = arith.constant 0 : i32
    %c0_i32_0 = arith.constant 0 : i32
    return %arg0, %c0_i32 : i32, i32
  }
}

</mosaic_0001>

<llo_original>
// kernel: masked_feedforward_forward.1
$region0: #{masked_feedforward_forward.1}
  #allocation0 [shape = 'u32[]', space=smem, size = 0x4, offset = 0x4, fixed_abs, tag = 'smem constant byte address 0x4 - core index']
  #allocation1 [shape = 'u32[72,128]{1,0:T(1,128)}', space=vmem, size = 0x9000, scoped, tag = 'internal scratch']
  %s0 = inlined_call_operand.vmem [shape: f32[3,128], index: 0, kind: input, shape index: {}]
  %s1 = inlined_call_operand.vmem [shape: f32[128,128], index: 1, kind: input, shape index: {}]
  %s2 = inlined_call_operand.vmem [shape: f32[1,128], index: 2, kind: input, shape index: {}]
  %s3 = inlined_call_operand.vmem [shape: f32[3,128], index: 3, kind: output, shape index: {}]
  %s4 = sld [smem:[#allocation0]]
  $region52: #{masked_feedforward_forward.1} parent=0
    _
  %s6 = ssub.s32 1, %s4
  %s7 = scalar_select 0, %s6, %s4
  $region1: #{masked_feedforward_forward.1} parent=0
    #allocation2 [shape = 'u8[4096]{0}', space=vmem, size = 0x1000, scoped, tag = 'output window, operand 0, single buffered']
    // Predicated region
    $region2: #{masked_feedforward_forward.1} parent=1 // pred_check
      _
    $region3: #{masked_feedforward_forward.1} parent=1 // pred_check_branch
      %9 = sbr.rel (0) target = $region5
    $region4: #{masked_feedforward_forward.1} parent=1 // pred_region
      _
    $region5: #{masked_feedforward_forward.1} parent=1 // pred_fallthru
      _
    // Predicated region
    $region6: #{masked_feedforward_forward.1} parent=1 // pred_check
      _
    $region7: #{masked_feedforward_forward.1} parent=1 // pred_check_branch
      %11 = sbr.rel (0) target = $region9
    $region8: #{masked_feedforward_forward.1} parent=1 // pred_region
      _
    $region9: #{masked_feedforward_forward.1} parent=1 // pred_fallthru
      _
    // Predicated region
    $region10: #{masked_feedforward_forward.1} parent=1 // pred_check
      _
    $region11: #{masked_feedforward_forward.1} parent=1 // pred_check_branch
      %13 = sbr.rel (0) target = $region13
    $region12: #{masked_feedforward_forward.1} parent=1 // pred_region
      _
    $region13: #{masked_feedforward_forward.1} parent=1 // pred_fallthru
      _
    %v14 = vld [vmem:[%s0] sm:$0xff]
    %v15 = vld [vmem:[%s1] sm:$0xff]
    %v16 = vld [vmem:[%s1 + $0x8] sm:$0xff]
    %v17 = vld [vmem:[%s1 + $0x10] sm:$0xff]
    %v18 = vld [vmem:[%s1 + $0x18] sm:$0xff]
    %v19 = vld [vmem:[%s1 + $0x20] sm:$0xff]
    %v20 = vld [vmem:[%s1 + $0x28] sm:$0xff]
    %v21 = vld [vmem:[%s1 + $0x30] sm:$0xff]
    %v22 = vld [vmem:[%s1 + $0x38] sm:$0xff]
    %v23 = vld [vmem:[%s1 + $0x40] sm:$0xff]
    %v24 = vld [vmem:[%s1 + $0x48] sm:$0xff]
    %v25 = vld [vmem:[%s1 + $0x50] sm:$0xff]
    %v26 = vld [vmem:[%s1 + $0x58] sm:$0xff]
    %v27 = vld [vmem:[%s1 + $0x60] sm:$0xff]
    %v28 = vld [vmem:[%s1 + $0x68] sm:$0xff]
    %v29 = vld [vmem:[%s1 + $0x70] sm:$0xff]
    %v30 = vld [vmem:[%s1 + $0x78] sm:$0xff]
    %v31 = vld [vmem:[%s2] sm:$0x1]
    %v33 = vperm.slane %v31, 0
    %35 = vmatpush.msra.mxu0 %v30
    %36 = vmatpush.msra.mxu0 %v29
    %37 = vmatpush.msra.mxu0 %v28
    %38 = vmatpush.msra.mxu0 %v27
    %39 = vmatpush.msra.mxu0 %v26
    %40 = vmatpush.msra.mxu0 %v25
    %41 = vmatpush.msra.mxu0 %v24
    %42 = vmatpush.msra.mxu0 %v23
    %43 = vmatpush.msra.mxu0 %v22
    %44 = vmatpush.msra.mxu0 %v21
    %45 = vmatpush.msra.mxu0 %v20
    %46 = vmatpush.msra.mxu0 %v19
    %47 = vmatpush.msra.mxu0 %v18
    %48 = vmatpush.msra.mxu0 %v17
    %49 = vmatpush.msra.mxu0 %v16
    %50 = vmatpush.msra.mxu0 %v15
    %51 = vmatmul.f32.gmra.mxu0 %v14
    %v52 = vpop.f32.mrf.mxu0
    %v53 = vadd.f32 %v33, %v52
    %54 = vdwg.mxu0
    %v55 = vmax.f32 %v53, 0.0
    %56 = vst [vmem:[#allocation2] sm:$0xff] %v55
    // Predicated region
    $region14: #{masked_feedforward_forward.1} parent=1 // pred_check
      _
    $region15: #{masked_feedforward_forward.1} parent=1 // pred_check_branch
      %58 = sbr.rel (0) target = $region17
    $region16: #{masked_feedforward_forward.1} parent=1 // pred_region
      // Predicated region
      $region18: #{masked_feedforward_forward.1} parent=16 // pred_check
        _
      $region19: #{masked_feedforward_forward.1} parent=16 // pred_check_branch
        %60 = sbr.rel (0) target = $region21
      $region20: #{masked_feedforward_forward.1} parent=16 // pred_region
        // Predicated region
        $region22: #{masked_feedforward_forward.1} parent=20 // pred_check
          _
        $region23: #{masked_feedforward_forward.1} parent=20 // pred_check_branch
          %62 = sbr.rel target = $region25
        $region24: #{masked_feedforward_forward.1} parent=20 // pred_region
          // Predicated region
          $region37: #{masked_feedforward_forward.1} parent=24 // pred_check
            _
          $region38: #{masked_feedforward_forward.1} parent=24 // pred_check_branch
            %78 = sbr.rel (0) target = $region40
          $region39: #{masked_feedforward_forward.1} parent=24 // pred_region
            %s80 = ssub.s32 16, 1
            loop: start=0, step=1, limit=1
            $region41: #{masked_feedforward_forward.1} parent=39 // loop_pre_header
              _
            $region42: #{masked_feedforward_forward.1} parent=39 // loop_header
              %s82 = sphi 0, %s86
              %p83 = scmp.ge.s32.totalorder %s82, 1
              %s87 = sphi [#allocation2], [#allocation2]
              %s88 = sphi %s3, %s3
            $region43: #{masked_feedforward_forward.1} parent=39 // loop_header_branch
              %85 = sbr.rel (%p83) target = $region47
            $region44: #{masked_feedforward_forward.1} parent=39 // loop_body
              %v89 = vld [vmem:[%s87] sm:%s80]
              %90 = vst [vmem:[%s88] sm:%s80] %v89
            $region45: #{masked_feedforward_forward.1} parent=39 // loop_footer
              %s86 = sadd.s32 1, %s82
            $region46: #{masked_feedforward_forward.1} parent=39 // loop_footer_branch
              %81 = sbr.rel target = $region42
            $region47: #{masked_feedforward_forward.1} parent=39 // loop_exit
              _
          $region40: #{masked_feedforward_forward.1} parent=24 // pred_fallthru
            _
        $region25: #{masked_feedforward_forward.1} parent=20 // pred_fallthru
          _
        // Predicated region
        $region26: #{masked_feedforward_forward.1} parent=20 // pred_check
          _
        $region27: #{masked_feedforward_forward.1} parent=20 // pred_check_branch
          %64 = sbr.rel (0) target = $region29
        $region28: #{masked_feedforward_forward.1} parent=20 // pred_region
          %s66 = ssub.s32 16, 1
          loop: start=0, step=1, limit=1
          $region30: #{masked_feedforward_forward.1} parent=28 // loop_pre_header
            _
          $region31: #{masked_feedforward_forward.1} parent=28 // loop_header
            %s68 = sphi 0, %s72
            %p69 = scmp.ge.s32.totalorder %s68, 1
            %s73 = sphi [#allocation2], [#allocation2]
            %s74 = sphi %s3, %s3
          $region32: #{masked_feedforward_forward.1} parent=28 // loop_header_branch
            %71 = sbr.rel (%p69) target = $region36
          $region33: #{masked_feedforward_forward.1} parent=28 // loop_body
            %v75 = vld [vmem:[%s73] sm:%s66]
            %76 = vst [vmem:[%s74] sm:%s66] %v75
          $region34: #{masked_feedforward_forward.1} parent=28 // loop_footer
            %s72 = sadd.s32 1, %s68
          $region35: #{masked_feedforward_forward.1} parent=28 // loop_footer_branch
            %67 = sbr.rel target = $region31
          $region36: #{masked_feedforward_forward.1} parent=28 // loop_exit
            _
        $region29: #{masked_feedforward_forward.1} parent=20 // pred_fallthru
          _
      $region21: #{masked_feedforward_forward.1} parent=16 // pred_fallthru
        _
      %91 = vnop
    $region17: #{masked_feedforward_forward.1} parent=1 // pred_fallthru
      _
    // Predicated region
    $region48: #{masked_feedforward_forward.1} parent=1 // pred_check
      _
    $region49: #{masked_feedforward_forward.1} parent=1 // pred_check_branch
      %93 = sbr.rel (0) target = $region51
    $region50: #{masked_feedforward_forward.1} parent=1 // pred_region
      _
    $region51: #{masked_feedforward_forward.1} parent=1 // pred_fallthru
      _

</llo_original>
